<compile_context>
chip_gen: v7x
topology: tpu7x:2x2x1
jax: 0.10.0
libtpu: 0.0.40
codegen_flags: <defaults>
</compile_context>

<pallas_src>
import jax
import jax.numpy as jnp
from jax.experimental import pallas as pl
from jax.experimental.pallas import tpu as pltpu


def mlp_kernel(u_idx_ref,     # (B,)              int32, SMEM: user indices
               gx_ref,        # (I,)              int32, SMEM: graph.x item node ids
               scal_ref,      # (2,)              f32,   SMEM: [c, b1]
               user_tbl_ref,  # (u_nodes, 1, dim)      f32, VMEM: user embedding table
               item_tbl_ref,  # (i_nodes, 1, hidden_1) f32, VMEM: item embedding table
               i_mat_ref,     # (B, I)            f32, VMEM: dense "i" weighting matrix
               v_ref,         # (1, hidden_1)     f32, VMEM: folded fc_item weight @ w1_i
               w1u_ref,       # (1, dim)          f32, VMEM: fc1 weight row (user half)
               out_ref,       # (B, 1)            f32, VMEM: sigmoid output
               u_emb_sc):     # (B, dim)          f32, VMEM scratch: gathered user rows
    B, I = i_mat_ref.shape
    c = scal_ref[0]           # b_item . w1_i  (folded fc_item bias contribution)
    b1 = scal_ref[1]          # fc1 bias

    # ---- user half: gather the B user rows, then one VPU lane-reduce against
    #      the user half of the fc1 weight (replaces the (B,dim)@(dim,1) matmul).
    for b in range(B):                                   # static unroll, B small
        u_emb_sc[pl.ds(b, 1), :] = user_tbl_ref[u_idx_ref[b]]     # (1, dim)
    u_logit = jnp.sum(u_emb_sc[...] * w1u_ref[...], axis=-1, keepdims=True)  # (B, 1)

    # ---- item half (fc_item folded into fc1):
    #      score_j = item_emb[graph_x[j]] . v + c, built directly as a lane-dense
    #      (1, I) row via iota-select so the i_mat contraction stays on the VPU.
    lane = jax.lax.broadcasted_iota(jnp.int32, (1, I), 1)
    scores = jnp.zeros((1, I), jnp.float32)
    for j in range(I):                                   # static unroll, I small
        row = item_tbl_ref[gx_ref[j]]                    # (1, hidden_1) dynamic row
        s_j = jnp.sum(row * v_ref[...], axis=-1, keepdims=True)   # (1, 1)
        scores = jnp.where(lane == j, s_j, scores)       # place at lane j
    scores = scores + c                                  # (1, I)

    # torch.matmul(i, fc_item(item_emb)) contracted against w1_i == i_mat @ scores
    i_logit = jnp.sum(i_mat_ref[...] * scores, axis=-1, keepdims=True)        # (B, 1)

    out_ref[...] = jax.nn.sigmoid(u_logit + i_logit + b1)


def prepare_params(params):
    """ONE-TIME parameter preparation (fold / transpose / reshape), hoisted out
    of the per-call forward path."""
    user_tbl = params["user_embedding"]          # (u_nodes, dim)
    item_tbl = params["item_embedding"]          # (i_nodes, hidden_1)
    w_item = params["fc_item_w"]                 # (dim, hidden_1) torch layout
    b_item = params["fc_item_b"]                 # (dim,)
    w1 = params["fc1_w"]                         # (1, 2*dim)      torch layout
    b1 = params["fc1_b"]                         # (1,)
    dim = user_tbl.shape[1]

    w1_u = w1[:, :dim]                           # (1, dim)  user half of fc1
    w1_i = w1[:, dim:]                           # (1, dim)  item half of fc1
    # Fold fc_item into fc1's item half (fc1 has a single output column):
    v_row = (w1_i @ w_item).astype(jnp.float32)          # (1, hidden_1)
    c = jnp.dot(w1_i[0], b_item)                         # scalar
    scalars = jnp.stack([c, b1[0]]).astype(jnp.float32)  # (2,) = [c, b1]

    return {
        # Tables reshaped to (rows, 1, feat): dynamic row gather indexes the
        # leading (untiled) dim — simple address arithmetic inside the kernel.
        "user_embedding": user_tbl[:, None, :].astype(jnp.float32),
        "item_embedding": item_tbl[:, None, :].astype(jnp.float32),
        "w1_u_row": w1_u.astype(jnp.float32),    # (1, dim)
        "v_row": v_row,                          # (1, hidden_1)
        "scalars": scalars,                      # (2,)
    }


@jax.jit
def mlp_model_forward(u, i_mat, graph_x, prepared):
    """Per-call forward: no weight-layout work here, just the fused kernel."""
    user_tbl = prepared["user_embedding"]        # (u_nodes, 1, dim)
    item_tbl = prepared["item_embedding"]        # (i_nodes, 1, hidden_1)
    v_row = prepared["v_row"]                    # (1, hidden_1)
    w1_u_row = prepared["w1_u_row"]              # (1, dim)
    scalars = prepared["scalars"]                # (2,)

    B = u.shape[0]
    dim = user_tbl.shape[-1]

    smem = pl.BlockSpec(memory_space=pltpu.MemorySpace.SMEM)
    vmem = pl.BlockSpec(memory_space=pltpu.MemorySpace.VMEM)

    out = pl.pallas_call(
        mlp_kernel,
        out_shape=jax.ShapeDtypeStruct((B, 1), jnp.float32),
        in_specs=[smem, smem, smem, vmem, vmem, vmem, vmem, vmem],
        out_specs=vmem,
        scratch_shapes=[pltpu.VMEM((B, dim), jnp.float32)],
    )(u.astype(jnp.int32), graph_x.astype(jnp.int32), scalars,
      user_tbl, item_tbl, i_mat, v_row, w1_u_row)
    return out


def init_params(key, dim, hidden_1, u_nodes, i_nodes):
    ks = jax.random.split(key, 6)
    # Deterministic synthetic init (roughly torch default scales).
    return {
        "user_embedding": jax.random.normal(ks[0], (u_nodes, dim), jnp.float32),
        "item_embedding": jax.random.normal(ks[1], (i_nodes, hidden_1), jnp.float32),
        "fc_item_w": jax.random.uniform(ks[2], (dim, hidden_1), jnp.float32,
                                        -1.0 / hidden_1 ** 0.5, 1.0 / hidden_1 ** 0.5),
        "fc_item_b": jax.random.uniform(ks[3], (dim,), jnp.float32,
                                        -1.0 / hidden_1 ** 0.5, 1.0 / hidden_1 ** 0.5),
        "fc1_w": jax.random.uniform(ks[4], (1, 2 * dim), jnp.float32,
                                    -1.0 / (2 * dim) ** 0.5, 1.0 / (2 * dim) ** 0.5),
        "fc1_b": jax.random.uniform(ks[5], (1,), jnp.float32,
                                    -1.0 / (2 * dim) ** 0.5, 1.0 / (2 * dim) ** 0.5),
    }


def reference_forward(u, i_mat, graph_x, params):
    """Pure-JAX reference mirroring the PyTorch forward (unfolded)."""
    dim = params["user_embedding"].shape[1]
    u_emb = jnp.take(params["user_embedding"], u, axis=0)
    i_emb = jnp.take(params["item_embedding"], graph_x, axis=0)
    i_emb = i_emb @ params["fc_item_w"].T + params["fc_item_b"]
    i_emb = jnp.squeeze(i_mat @ i_emb)
    u_i = jnp.concatenate((u_emb, i_emb.reshape(-1, dim)), axis=1)
    out = u_i @ params["fc1_w"].T + params["fc1_b"]
    return jax.nn.sigmoid(out)


if __name__ == "__main__":
    # Small, forward-consistent shapes.  hidden_2 is unused by forward().
    dim, hidden_1, hidden_2 = 16, 32, 24
    u_nodes, i_nodes = 20, 16
    B = 8

    key = jax.random.PRNGKey(0)
    k_params, k_u, k_i = jax.random.split(key, 3)

    params = init_params(k_params, dim, hidden_1, u_nodes, i_nodes)
    prepared = prepare_params(params)      # one-time fold / layout prep

    # Inputs: u = user indices (B,), graph.x = item node ids (i_nodes,),
    # i = dense (B, i_nodes) weighting matrix (as in torch.matmul(i, i_embedding)).
    u = jax.random.randint(k_u, (B,), 0, u_nodes, dtype=jnp.int32)
    graph_x = jnp.arange(i_nodes, dtype=jnp.int32)
    i_mat = jax.random.normal(k_i, (B, i_nodes), jnp.float32)

    out = mlp_model_forward(u, i_mat, graph_x, prepared)
    out = jax.block_until_ready(out)

    ref = reference_forward(u, i_mat, graph_x, params)
    assert out.shape == (B, 1), out.shape
    assert jnp.allclose(out, ref, atol=1e-5, rtol=1e-5), (out, ref)

    print("KERNEL_OK")
</pallas_src>

<mosaic_0001>
module attributes {stable_mosaic.version = 11 : i64} {
  func.func @mlp_kernel(%arg0: memref<8xi32, #tpu.memory_space<smem>>, %arg1: memref<16xi32, #tpu.memory_space<smem>>, %arg2: memref<2xf32, #tpu.memory_space<smem>>, %arg3: memref<20x1x16xf32, #tpu.memory_space<vmem>>, %arg4: memref<16x1x32xf32, #tpu.memory_space<vmem>>, %arg5: memref<8x16xf32, #tpu.memory_space<vmem>>, %arg6: memref<1x32xf32, #tpu.memory_space<vmem>>, %arg7: memref<1x16xf32, #tpu.memory_space<vmem>>, %arg8: memref<8x1xf32, #tpu.memory_space<vmem>>, %arg9: memref<8x16xf32, #tpu.memory_space<vmem>>) attributes {dimension_semantics = [], scalar_prefetch = 0 : i64, scratch_operands = 1 : i64, tpu.core_type = #tpu.core_type<tc>} {
    %c0 = arith.constant 0 : index
    %0 = memref.load %arg2[%c0] : memref<2xf32, #tpu.memory_space<smem>>
    %c1 = arith.constant 1 : index
    %1 = memref.load %arg2[%c1] : memref<2xf32, #tpu.memory_space<smem>>
    %c0_0 = arith.constant 0 : index
    %2 = memref.load %arg0[%c0_0] : memref<8xi32, #tpu.memory_space<smem>>
    %3 = arith.index_cast %2 : i32 to index
    %c0_1 = arith.constant 0 : index
    %c0_2 = arith.constant 0 : index
    %4 = vector.load %arg3[%3, %c0_1, %c0_2] : memref<20x1x16xf32, #tpu.memory_space<vmem>>, vector<1x1x16xf32>
    %5 = vector.shape_cast %4 : vector<1x1x16xf32> to vector<1x16xf32>
    %c0_3 = arith.constant 0 : index
    %c0_4 = arith.constant 0 : index
    %6 = vector.load %arg9[%c0_3, %c0_4] : memref<8x16xf32, #tpu.memory_space<vmem>>, vector<1x16xf32>
    tpu.vector_store %arg9[%c0_3, %c0_4], %5 {strides = array<i32>} : memref<8x16xf32, #tpu.memory_space<vmem>>, vector<1x16xf32>,
    %c1_5 = arith.constant 1 : index
    %7 = memref.load %arg0[%c1_5] : memref<8xi32, #tpu.memory_space<smem>>
    %8 = arith.index_cast %7 : i32 to index
    %c0_6 = arith.constant 0 : index
    %c0_7 = arith.constant 0 : index
    %9 = vector.load %arg3[%8, %c0_6, %c0_7] : memref<20x1x16xf32, #tpu.memory_space<vmem>>, vector<1x1x16xf32>
    %10 = vector.shape_cast %9 : vector<1x1x16xf32> to vector<1x16xf32>
    %c1_8 = arith.constant 1 : index
    %c0_9 = arith.constant 0 : index
    %11 = vector.load %arg9[%c1_8, %c0_9] : memref<8x16xf32, #tpu.memory_space<vmem>>, vector<1x16xf32>
    tpu.vector_store %arg9[%c1_8, %c0_9], %10 {strides = array<i32>} : memref<8x16xf32, #tpu.memory_space<vmem>>, vector<1x16xf32>,
    %c2 = arith.constant 2 : index
    %12 = memref.load %arg0[%c2] : memref<8xi32, #tpu.memory_space<smem>>
    %13 = arith.index_cast %12 : i32 to index
    %c0_10 = arith.constant 0 : index
    %c0_11 = arith.constant 0 : index
    %14 = vector.load %arg3[%13, %c0_10, %c0_11] : memref<20x1x16xf32, #tpu.memory_space<vmem>>, vector<1x1x16xf32>
    %15 = vector.shape_cast %14 : vector<1x1x16xf32> to vector<1x16xf32>
    %c2_12 = arith.constant 2 : index
    %c0_13 = arith.constant 0 : index
    %16 = vector.load %arg9[%c2_12, %c0_13] : memref<8x16xf32, #tpu.memory_space<vmem>>, vector<1x16xf32>
    tpu.vector_store %arg9[%c2_12, %c0_13], %15 {strides = array<i32>} : memref<8x16xf32, #tpu.memory_space<vmem>>, vector<1x16xf32>,
    %c3 = arith.constant 3 : index
    %17 = memref.load %arg0[%c3] : memref<8xi32, #tpu.memory_space<smem>>
    %18 = arith.index_cast %17 : i32 to index
    %c0_14 = arith.constant 0 : index
    %c0_15 = arith.constant 0 : index
    %19 = vector.load %arg3[%18, %c0_14, %c0_15] : memref<20x1x16xf32, #tpu.memory_space<vmem>>, vector<1x1x16xf32>
    %20 = vector.shape_cast %19 : vector<1x1x16xf32> to vector<1x16xf32>
    %c3_16 = arith.constant 3 : index
    %c0_17 = arith.constant 0 : index
    %21 = vector.load %arg9[%c3_16, %c0_17] : memref<8x16xf32, #tpu.memory_space<vmem>>, vector<1x16xf32>
    tpu.vector_store %arg9[%c3_16, %c0_17], %20 {strides = array<i32>} : memref<8x16xf32, #tpu.memory_space<vmem>>, vector<1x16xf32>,
    %c4 = arith.constant 4 : index
    %22 = memref.load %arg0[%c4] : memref<8xi32, #tpu.memory_space<smem>>
    %23 = arith.index_cast %22 : i32 to index
    %c0_18 = arith.constant 0 : index
    %c0_19 = arith.constant 0 : index
    %24 = vector.load %arg3[%23, %c0_18, %c0_19] : memref<20x1x16xf32, #tpu.memory_space<vmem>>, vector<1x1x16xf32>
    %25 = vector.shape_cast %24 : vector<1x1x16xf32> to vector<1x16xf32>
    %c4_20 = arith.constant 4 : index
    %c0_21 = arith.constant 0 : index
    %26 = vector.load %arg9[%c4_20, %c0_21] : memref<8x16xf32, #tpu.memory_space<vmem>>, vector<1x16xf32>
    tpu.vector_store %arg9[%c4_20, %c0_21], %25 {strides = array<i32>} : memref<8x16xf32, #tpu.memory_space<vmem>>, vector<1x16xf32>,
    %c5 = arith.constant 5 : index
    %27 = memref.load %arg0[%c5] : memref<8xi32, #tpu.memory_space<smem>>
    %28 = arith.index_cast %27 : i32 to index
    %c0_22 = arith.constant 0 : index
    %c0_23 = arith.constant 0 : index
    %29 = vector.load %arg3[%28, %c0_22, %c0_23] : memref<20x1x16xf32, #tpu.memory_space<vmem>>, vector<1x1x16xf32>
    %30 = vector.shape_cast %29 : vector<1x1x16xf32> to vector<1x16xf32>
    %c5_24 = arith.constant 5 : index
    %c0_25 = arith.constant 0 : index
    %31 = vector.load %arg9[%c5_24, %c0_25] : memref<8x16xf32, #tpu.memory_space<vmem>>, vector<1x16xf32>
    tpu.vector_store %arg9[%c5_24, %c0_25], %30 {strides = array<i32>} : memref<8x16xf32, #tpu.memory_space<vmem>>, vector<1x16xf32>,
    %c6 = arith.constant 6 : index
    %32 = memref.load %arg0[%c6] : memref<8xi32, #tpu.memory_space<smem>>
    %33 = arith.index_cast %32 : i32 to index
    %c0_26 = arith.constant 0 : index
    %c0_27 = arith.constant 0 : index
    %34 = vector.load %arg3[%33, %c0_26, %c0_27] : memref<20x1x16xf32, #tpu.memory_space<vmem>>, vector<1x1x16xf32>
    %35 = vector.shape_cast %34 : vector<1x1x16xf32> to vector<1x16xf32>
    %c6_28 = arith.constant 6 : index
    %c0_29 = arith.constant 0 : index
    %36 = vector.load %arg9[%c6_28, %c0_29] : memref<8x16xf32, #tpu.memory_space<vmem>>, vector<1x16xf32>
    tpu.vector_store %arg9[%c6_28, %c0_29], %35 {strides = array<i32>} : memref<8x16xf32, #tpu.memory_space<vmem>>, vector<1x16xf32>,
    %c7 = arith.constant 7 : index
    %37 = memref.load %arg0[%c7] : memref<8xi32, #tpu.memory_space<smem>>
    %38 = arith.index_cast %37 : i32 to index
    %c0_30 = arith.constant 0 : index
    %c0_31 = arith.constant 0 : index
    %39 = vector.load %arg3[%38, %c0_30, %c0_31] : memref<20x1x16xf32, #tpu.memory_space<vmem>>, vector<1x1x16xf32>
    %40 = vector.shape_cast %39 : vector<1x1x16xf32> to vector<1x16xf32>
    %c7_32 = arith.constant 7 : index
    %c0_33 = arith.constant 0 : index
    %41 = vector.load %arg9[%c7_32, %c0_33] : memref<8x16xf32, #tpu.memory_space<vmem>>, vector<1x16xf32>
    tpu.vector_store %arg9[%c7_32, %c0_33], %40 {strides = array<i32>} : memref<8x16xf32, #tpu.memory_space<vmem>>, vector<1x16xf32>,
    %c0_34 = arith.constant 0 : index
    %c0_35 = arith.constant 0 : index
    %42 = vector.load %arg9[%c0_34, %c0_35] : memref<8x16xf32, #tpu.memory_space<vmem>>, vector<8x16xf32>
    %c0_36 = arith.constant 0 : index
    %c0_37 = arith.constant 0 : index
    %43 = vector.load %arg7[%c0_36, %c0_37] : memref<1x16xf32, #tpu.memory_space<vmem>>, vector<1x16xf32>
    %44 = vector.broadcast %43 : vector<1x16xf32> to vector<8x16xf32>
    %45 = arith.mulf %42, %44 : vector<8x16xf32>
    %cst = arith.constant dense<0.000000e+00> : vector<8xf32>
    %46 = vector.multi_reduction <add>, %45, %cst [1] : vector<8x16xf32> to vector<8xf32>
    %47 = vector.shape_cast %46 : vector<8xf32> to vector<8x1xf32>
    %48 = tpu.iota {dimensions = array<i32: 1>} : vector<1x16xi32>
    %cst_38 = arith.constant 0.000000e+00 : f32
    %49 = vector.broadcast %cst_38 : f32 to vector<1x16xf32>
    %c0_39 = arith.constant 0 : index
    %50 = memref.load %arg1[%c0_39] : memref<16xi32, #tpu.memory_space<smem>>
    %51 = arith.index_cast %50 : i32 to index
    %c0_40 = arith.constant 0 : index
    %c0_41 = arith.constant 0 : index
    %52 = vector.load %arg4[%51, %c0_40, %c0_41] : memref<16x1x32xf32, #tpu.memory_space<vmem>>, vector<1x1x32xf32>
    %53 = vector.shape_cast %52 : vector<1x1x32xf32> to vector<1x32xf32>
    %c0_42 = arith.constant 0 : index
    %c0_43 = arith.constant 0 : index
    %54 = vector.load %arg6[%c0_42, %c0_43] : memref<1x32xf32, #tpu.memory_space<vmem>>, vector<1x32xf32>
    %55 = arith.mulf %53, %54 : vector<1x32xf32>
    %cst_44 = arith.constant dense<0.000000e+00> : vector<1xf32>
    %56 = vector.multi_reduction <add>, %55, %cst_44 [1] : vector<1x32xf32> to vector<1xf32>
    %57 = vector.shape_cast %56 : vector<1xf32> to vector<1x1xf32>
    %c0_i32 = arith.constant 0 : i32
    %58 = vector.broadcast %c0_i32 : i32 to vector<1x16xi32>
    %59 = arith.cmpi eq, %48, %58 : vector<1x16xi32>
    %60 = vector.shape_cast %57 : vector<1x1xf32> to vector<1x1xf32>
    %61 = vector.broadcast %60 : vector<1x1xf32> to vector<1x16xf32>
    %62 = arith.select %59, %61, %49 : vector<1x16xi1>, vector<1x16xf32>
    %c1_45 = arith.constant 1 : index
    %63 = memref.load %arg1[%c1_45] : memref<16xi32, #tpu.memory_space<smem>>
    %64 = arith.index_cast %63 : i32 to index
    %c0_46 = arith.constant 0 : index
    %c0_47 = arith.constant 0 : index
    %65 = vector.load %arg4[%64, %c0_46, %c0_47] : memref<16x1x32xf32, #tpu.memory_space<vmem>>, vector<1x1x32xf32>
    %66 = vector.shape_cast %65 : vector<1x1x32xf32> to vector<1x32xf32>
    %c0_48 = arith.constant 0 : index
    %c0_49 = arith.constant 0 : index
    %67 = vector.load %arg6[%c0_48, %c0_49] : memref<1x32xf32, #tpu.memory_space<vmem>>, vector<1x32xf32>
    %68 = arith.mulf %66, %67 : vector<1x32xf32>
    %cst_50 = arith.constant dense<0.000000e+00> : vector<1xf32>
    %69 = vector.multi_reduction <add>, %68, %cst_50 [1] : vector<1x32xf32> to vector<1xf32>
    %70 = vector.shape_cast %69 : vector<1xf32> to vector<1x1xf32>
    %c1_i32 = arith.constant 1 : i32
    %71 = vector.broadcast %c1_i32 : i32 to vector<1x16xi32>
    %72 = arith.cmpi eq, %48, %71 : vector<1x16xi32>
    %73 = vector.shape_cast %70 : vector<1x1xf32> to vector<1x1xf32>
    %74 = vector.broadcast %73 : vector<1x1xf32> to vector<1x16xf32>
    %75 = arith.select %72, %74, %62 : vector<1x16xi1>, vector<1x16xf32>
    %c2_51 = arith.constant 2 : index
    %76 = memref.load %arg1[%c2_51] : memref<16xi32, #tpu.memory_space<smem>>
    %77 = arith.index_cast %76 : i32 to index
    %c0_52 = arith.constant 0 : index
    %c0_53 = arith.constant 0 : index
    %78 = vector.load %arg4[%77, %c0_52, %c0_53] : memref<16x1x32xf32, #tpu.memory_space<vmem>>, vector<1x1x32xf32>
    %79 = vector.shape_cast %78 : vector<1x1x32xf32> to vector<1x32xf32>
    %c0_54 = arith.constant 0 : index
    %c0_55 = arith.constant 0 : index
    %80 = vector.load %arg6[%c0_54, %c0_55] : memref<1x32xf32, #tpu.memory_space<vmem>>, vector<1x32xf32>
    %81 = arith.mulf %79, %80 : vector<1x32xf32>
    %cst_56 = arith.constant dense<0.000000e+00> : vector<1xf32>
    %82 = vector.multi_reduction <add>, %81, %cst_56 [1] : vector<1x32xf32> to vector<1xf32>
    %83 = vector.shape_cast %82 : vector<1xf32> to vector<1x1xf32>
    %c2_i32 = arith.constant 2 : i32
    %84 = vector.broadcast %c2_i32 : i32 to vector<1x16xi32>
    %85 = arith.cmpi eq, %48, %84 : vector<1x16xi32>
    %86 = vector.shape_cast %83 : vector<1x1xf32> to vector<1x1xf32>
    %87 = vector.broadcast %86 : vector<1x1xf32> to vector<1x16xf32>
    %88 = arith.select %85, %87, %75 : vector<1x16xi1>, vector<1x16xf32>
    %c3_57 = arith.constant 3 : index
    %89 = memref.load %arg1[%c3_57] : memref<16xi32, #tpu.memory_space<smem>>
    %90 = arith.index_cast %89 : i32 to index
    %c0_58 = arith.constant 0 : index
    %c0_59 = arith.constant 0 : index
    %91 = vector.load %arg4[%90, %c0_58, %c0_59] : memref<16x1x32xf32, #tpu.memory_space<vmem>>, vector<1x1x32xf32>
    %92 = vector.shape_cast %91 : vector<1x1x32xf32> to vector<1x32xf32>
    %c0_60 = arith.constant 0 : index
    %c0_61 = arith.constant 0 : index
    %93 = vector.load %arg6[%c0_60, %c0_61] : memref<1x32xf32, #tpu.memory_space<vmem>>, vector<1x32xf32>
    %94 = arith.mulf %92, %93 : vector<1x32xf32>
    %cst_62 = arith.constant dense<0.000000e+00> : vector<1xf32>
    %95 = vector.multi_reduction <add>, %94, %cst_62 [1] : vector<1x32xf32> to vector<1xf32>
    %96 = vector.shape_cast %95 : vector<1xf32> to vector<1x1xf32>
    %c3_i32 = arith.constant 3 : i32
    %97 = vector.broadcast %c3_i32 : i32 to vector<1x16xi32>
    %98 = arith.cmpi eq, %48, %97 : vector<1x16xi32>
    %99 = vector.shape_cast %96 : vector<1x1xf32> to vector<1x1xf32>
    %100 = vector.broadcast %99 : vector<1x1xf32> to vector<1x16xf32>
    %101 = arith.select %98, %100, %88 : vector<1x16xi1>, vector<1x16xf32>
    %c4_63 = arith.constant 4 : index
    %102 = memref.load %arg1[%c4_63] : memref<16xi32, #tpu.memory_space<smem>>
    %103 = arith.index_cast %102 : i32 to index
    %c0_64 = arith.constant 0 : index
    %c0_65 = arith.constant 0 : index
    %104 = vector.load %arg4[%103, %c0_64, %c0_65] : memref<16x1x32xf32, #tpu.memory_space<vmem>>, vector<1x1x32xf32>
    %105 = vector.shape_cast %104 : vector<1x1x32xf32> to vector<1x32xf32>
    %c0_66 = arith.constant 0 : index
    %c0_67 = arith.constant 0 : index
    %106 = vector.load %arg6[%c0_66, %c0_67] : memref<1x32xf32, #tpu.memory_space<vmem>>, vector<1x32xf32>
    %107 = arith.mulf %105, %106 : vector<1x32xf32>
    %cst_68 = arith.constant dense<0.000000e+00> : vector<1xf32>
    %108 = vector.multi_reduction <add>, %107, %cst_68 [1] : vector<1x32xf32> to vector<1xf32>
    %109 = vector.shape_cast %108 : vector<1xf32> to vector<1x1xf32>
    %c4_i32 = arith.constant 4 : i32
    %110 = vector.broadcast %c4_i32 : i32 to vector<1x16xi32>
    %111 = arith.cmpi eq, %48, %110 : vector<1x16xi32>
    %112 = vector.shape_cast %109 : vector<1x1xf32> to vector<1x1xf32>
    %113 = vector.broadcast %112 : vector<1x1xf32> to vector<1x16xf32>
    %114 = arith.select %111, %113, %101 : vector<1x16xi1>, vector<1x16xf32>
    %c5_69 = arith.constant 5 : index
    %115 = memref.load %arg1[%c5_69] : memref<16xi32, #tpu.memory_space<smem>>
    %116 = arith.index_cast %115 : i32 to index
    %c0_70 = arith.constant 0 : index
    %c0_71 = arith.constant 0 : index
    %117 = vector.load %arg4[%116, %c0_70, %c0_71] : memref<16x1x32xf32, #tpu.memory_space<vmem>>, vector<1x1x32xf32>
    %118 = vector.shape_cast %117 : vector<1x1x32xf32> to vector<1x32xf32>
    %c0_72 = arith.constant 0 : index
    %c0_73 = arith.constant 0 : index
    %119 = vector.load %arg6[%c0_72, %c0_73] : memref<1x32xf32, #tpu.memory_space<vmem>>, vector<1x32xf32>
    %120 = arith.mulf %118, %119 : vector<1x32xf32>
    %cst_74 = arith.constant dense<0.000000e+00> : vector<1xf32>
    %121 = vector.multi_reduction <add>, %120, %cst_74 [1] : vector<1x32xf32> to vector<1xf32>
    %122 = vector.shape_cast %121 : vector<1xf32> to vector<1x1xf32>
    %c5_i32 = arith.constant 5 : i32
    %123 = vector.broadcast %c5_i32 : i32 to vector<1x16xi32>
    %124 = arith.cmpi eq, %48, %123 : vector<1x16xi32>
    %125 = vector.shape_cast %122 : vector<1x1xf32> to vector<1x1xf32>
    %126 = vector.broadcast %125 : vector<1x1xf32> to vector<1x16xf32>
    %127 = arith.select %124, %126, %114 : vector<1x16xi1>, vector<1x16xf32>
    %c6_75 = arith.constant 6 : index
    %128 = memref.load %arg1[%c6_75] : memref<16xi32, #tpu.memory_space<smem>>
    %129 = arith.index_cast %128 : i32 to index
    %c0_76 = arith.constant 0 : index
    %c0_77 = arith.constant 0 : index
    %130 = vector.load %arg4[%129, %c0_76, %c0_77] : memref<16x1x32xf32, #tpu.memory_space<vmem>>, vector<1x1x32xf32>
    %131 = vector.shape_cast %130 : vector<1x1x32xf32> to vector<1x32xf32>
    %c0_78 = arith.constant 0 : index
    %c0_79 = arith.constant 0 : index
    %132 = vector.load %arg6[%c0_78, %c0_79] : memref<1x32xf32, #tpu.memory_space<vmem>>, vector<1x32xf32>
    %133 = arith.mulf %131, %132 : vector<1x32xf32>
    %cst_80 = arith.constant dense<0.000000e+00> : vector<1xf32>
    %134 = vector.multi_reduction <add>, %133, %cst_80 [1] : vector<1x32xf32> to vector<1xf32>
    %135 = vector.shape_cast %134 : vector<1xf32> to vector<1x1xf32>
    %c6_i32 = arith.constant 6 : i32
    %136 = vector.broadcast %c6_i32 : i32 to vector<1x16xi32>
    %137 = arith.cmpi eq, %48, %136 : vector<1x16xi32>
    %138 = vector.shape_cast %135 : vector<1x1xf32> to vector<1x1xf32>
    %139 = vector.broadcast %138 : vector<1x1xf32> to vector<1x16xf32>
    %140 = arith.select %137, %139, %127 : vector<1x16xi1>, vector<1x16xf32>
    %c7_81 = arith.constant 7 : index
    %141 = memref.load %arg1[%c7_81] : memref<16xi32, #tpu.memory_space<smem>>
    %142 = arith.index_cast %141 : i32 to index
    %c0_82 = arith.constant 0 : index
    %c0_83 = arith.constant 0 : index
    %143 = vector.load %arg4[%142, %c0_82, %c0_83] : memref<16x1x32xf32, #tpu.memory_space<vmem>>, vector<1x1x32xf32>
    %144 = vector.shape_cast %143 : vector<1x1x32xf32> to vector<1x32xf32>
    %c0_84 = arith.constant 0 : index
    %c0_85 = arith.constant 0 : index
    %145 = vector.load %arg6[%c0_84, %c0_85] : memref<1x32xf32, #tpu.memory_space<vmem>>, vector<1x32xf32>
    %146 = arith.mulf %144, %145 : vector<1x32xf32>
    %cst_86 = arith.constant dense<0.000000e+00> : vector<1xf32>
    %147 = vector.multi_reduction <add>, %146, %cst_86 [1] : vector<1x32xf32> to vector<1xf32>
    %148 = vector.shape_cast %147 : vector<1xf32> to vector<1x1xf32>
    %c7_i32 = arith.constant 7 : i32
    %149 = vector.broadcast %c7_i32 : i32 to vector<1x16xi32>
    %150 = arith.cmpi eq, %48, %149 : vector<1x16xi32>
    %151 = vector.shape_cast %148 : vector<1x1xf32> to vector<1x1xf32>
    %152 = vector.broadcast %151 : vector<1x1xf32> to vector<1x16xf32>
    %153 = arith.select %150, %152, %140 : vector<1x16xi1>, vector<1x16xf32>
    %c8 = arith.constant 8 : index
    %154 = memref.load %arg1[%c8] : memref<16xi32, #tpu.memory_space<smem>>
    %155 = arith.index_cast %154 : i32 to index
    %c0_87 = arith.constant 0 : index
    %c0_88 = arith.constant 0 : index
    %156 = vector.load %arg4[%155, %c0_87, %c0_88] : memref<16x1x32xf32, #tpu.memory_space<vmem>>, vector<1x1x32xf32>
    %157 = vector.shape_cast %156 : vector<1x1x32xf32> to vector<1x32xf32>
    %c0_89 = arith.constant 0 : index
    %c0_90 = arith.constant 0 : index
    %158 = vector.load %arg6[%c0_89, %c0_90] : memref<1x32xf32, #tpu.memory_space<vmem>>, vector<1x32xf32>
    %159 = arith.mulf %157, %158 : vector<1x32xf32>
    %cst_91 = arith.constant dense<0.000000e+00> : vector<1xf32>
    %160 = vector.multi_reduction <add>, %159, %cst_91 [1] : vector<1x32xf32> to vector<1xf32>
    %161 = vector.shape_cast %160 : vector<1xf32> to vector<1x1xf32>
    %c8_i32 = arith.constant 8 : i32
    %162 = vector.broadcast %c8_i32 : i32 to vector<1x16xi32>
    %163 = arith.cmpi eq, %48, %162 : vector<1x16xi32>
    %164 = vector.shape_cast %161 : vector<1x1xf32> to vector<1x1xf32>
    %165 = vector.broadcast %164 : vector<1x1xf32> to vector<1x16xf32>
    %166 = arith.select %163, %165, %153 : vector<1x16xi1>, vector<1x16xf32>
    %c9 = arith.constant 9 : index
    %167 = memref.load %arg1[%c9] : memref<16xi32, #tpu.memory_space<smem>>
    %168 = arith.index_cast %167 : i32 to index
    %c0_92 = arith.constant 0 : index
    %c0_93 = arith.constant 0 : index
    %169 = vector.load %arg4[%168, %c0_92, %c0_93] : memref<16x1x32xf32, #tpu.memory_space<vmem>>, vector<1x1x32xf32>
    %170 = vector.shape_cast %169 : vector<1x1x32xf32> to vector<1x32xf32>
    %c0_94 = arith.constant 0 : index
    %c0_95 = arith.constant 0 : index
    %171 = vector.load %arg6[%c0_94, %c0_95] : memref<1x32xf32, #tpu.memory_space<vmem>>, vector<1x32xf32>
    %172 = arith.mulf %170, %171 : vector<1x32xf32>
    %cst_96 = arith.constant dense<0.000000e+00> : vector<1xf32>
    %173 = vector.multi_reduction <add>, %172, %cst_96 [1] : vector<1x32xf32> to vector<1xf32>
    %174 = vector.shape_cast %173 : vector<1xf32> to vector<1x1xf32>
    %c9_i32 = arith.constant 9 : i32
    %175 = vector.broadcast %c9_i32 : i32 to vector<1x16xi32>
    %176 = arith.cmpi eq, %48, %175 : vector<1x16xi32>
    %177 = vector.shape_cast %174 : vector<1x1xf32> to vector<1x1xf32>
    %178 = vector.broadcast %177 : vector<1x1xf32> to vector<1x16xf32>
    %179 = arith.select %176, %178, %166 : vector<1x16xi1>, vector<1x16xf32>
    %c10 = arith.constant 10 : index
    %180 = memref.load %arg1[%c10] : memref<16xi32, #tpu.memory_space<smem>>
    %181 = arith.index_cast %180 : i32 to index
    %c0_97 = arith.constant 0 : index
    %c0_98 = arith.constant 0 : index
    %182 = vector.load %arg4[%181, %c0_97, %c0_98] : memref<16x1x32xf32, #tpu.memory_space<vmem>>, vector<1x1x32xf32>
    %183 = vector.shape_cast %182 : vector<1x1x32xf32> to vector<1x32xf32>
    %c0_99 = arith.constant 0 : index
    %c0_100 = arith.constant 0 : index
    %184 = vector.load %arg6[%c0_99, %c0_100] : memref<1x32xf32, #tpu.memory_space<vmem>>, vector<1x32xf32>
    %185 = arith.mulf %183, %184 : vector<1x32xf32>
    %cst_101 = arith.constant dense<0.000000e+00> : vector<1xf32>
    %186 = vector.multi_reduction <add>, %185, %cst_101 [1] : vector<1x32xf32> to vector<1xf32>
    %187 = vector.shape_cast %186 : vector<1xf32> to vector<1x1xf32>
    %c10_i32 = arith.constant 10 : i32
    %188 = vector.broadcast %c10_i32 : i32 to vector<1x16xi32>
    %189 = arith.cmpi eq, %48, %188 : vector<1x16xi32>
    %190 = vector.shape_cast %187 : vector<1x1xf32> to vector<1x1xf32>
    %191 = vector.broadcast %190 : vector<1x1xf32> to vector<1x16xf32>
    %192 = arith.select %189, %191, %179 : vector<1x16xi1>, vector<1x16xf32>
    %c11 = arith.constant 11 : index
    %193 = memref.load %arg1[%c11] : memref<16xi32, #tpu.memory_space<smem>>
    %194 = arith.index_cast %193 : i32 to index
    %c0_102 = arith.constant 0 : index
    %c0_103 = arith.constant 0 : index
    %195 = vector.load %arg4[%194, %c0_102, %c0_103] : memref<16x1x32xf32, #tpu.memory_space<vmem>>, vector<1x1x32xf32>
    %196 = vector.shape_cast %195 : vector<1x1x32xf32> to vector<1x32xf32>
    %c0_104 = arith.constant 0 : index
    %c0_105 = arith.constant 0 : index
    %197 = vector.load %arg6[%c0_104, %c0_105] : memref<1x32xf32, #tpu.memory_space<vmem>>, vector<1x32xf32>
    %198 = arith.mulf %196, %197 : vector<1x32xf32>
    %cst_106 = arith.constant dense<0.000000e+00> : vector<1xf32>
    %199 = vector.multi_reduction <add>, %198, %cst_106 [1] : vector<1x32xf32> to vector<1xf32>
    %200 = vector.shape_cast %199 : vector<1xf32> to vector<1x1xf32>
    %c11_i32 = arith.constant 11 : i32
    %201 = vector.broadcast %c11_i32 : i32 to vector<1x16xi32>
    %202 = arith.cmpi eq, %48, %201 : vector<1x16xi32>
    %203 = vector.shape_cast %200 : vector<1x1xf32> to vector<1x1xf32>
    %204 = vector.broadcast %203 : vector<1x1xf32> to vector<1x16xf32>
    %205 = arith.select %202, %204, %192 : vector<1x16xi1>, vector<1x16xf32>
    %c12 = arith.constant 12 : index
    %206 = memref.load %arg1[%c12] : memref<16xi32, #tpu.memory_space<smem>>
    %207 = arith.index_cast %206 : i32 to index
    %c0_107 = arith.constant 0 : index
    %c0_108 = arith.constant 0 : index
    %208 = vector.load %arg4[%207, %c0_107, %c0_108] : memref<16x1x32xf32, #tpu.memory_space<vmem>>, vector<1x1x32xf32>
    %209 = vector.shape_cast %208 : vector<1x1x32xf32> to vector<1x32xf32>
    %c0_109 = arith.constant 0 : index
    %c0_110 = arith.constant 0 : index
    %210 = vector.load %arg6[%c0_109, %c0_110] : memref<1x32xf32, #tpu.memory_space<vmem>>, vector<1x32xf32>
    %211 = arith.mulf %209, %210 : vector<1x32xf32>
    %cst_111 = arith.constant dense<0.000000e+00> : vector<1xf32>
    %212 = vector.multi_reduction <add>, %211, %cst_111 [1] : vector<1x32xf32> to vector<1xf32>
    %213 = vector.shape_cast %212 : vector<1xf32> to vector<1x1xf32>
    %c12_i32 = arith.constant 12 : i32
    %214 = vector.broadcast %c12_i32 : i32 to vector<1x16xi32>
    %215 = arith.cmpi eq, %48, %214 : vector<1x16xi32>
    %216 = vector.shape_cast %213 : vector<1x1xf32> to vector<1x1xf32>
    %217 = vector.broadcast %216 : vector<1x1xf32> to vector<1x16xf32>
    %218 = arith.select %215, %217, %205 : vector<1x16xi1>, vector<1x16xf32>
    %c13 = arith.constant 13 : index
    %219 = memref.load %arg1[%c13] : memref<16xi32, #tpu.memory_space<smem>>
    %220 = arith.index_cast %219 : i32 to index
    %c0_112 = arith.constant 0 : index
    %c0_113 = arith.constant 0 : index
    %221 = vector.load %arg4[%220, %c0_112, %c0_113] : memref<16x1x32xf32, #tpu.memory_space<vmem>>, vector<1x1x32xf32>
    %222 = vector.shape_cast %221 : vector<1x1x32xf32> to vector<1x32xf32>
    %c0_114 = arith.constant 0 : index
    %c0_115 = arith.constant 0 : index
    %223 = vector.load %arg6[%c0_114, %c0_115] : memref<1x32xf32, #tpu.memory_space<vmem>>, vector<1x32xf32>
    %224 = arith.mulf %222, %223 : vector<1x32xf32>
    %cst_116 = arith.constant dense<0.000000e+00> : vector<1xf32>
    %225 = vector.multi_reduction <add>, %224, %cst_116 [1] : vector<1x32xf32> to vector<1xf32>
    %226 = vector.shape_cast %225 : vector<1xf32> to vector<1x1xf32>
    %c13_i32 = arith.constant 13 : i32
    %227 = vector.broadcast %c13_i32 : i32 to vector<1x16xi32>
    %228 = arith.cmpi eq, %48, %227 : vector<1x16xi32>
    %229 = vector.shape_cast %226 : vector<1x1xf32> to vector<1x1xf32>
    %230 = vector.broadcast %229 : vector<1x1xf32> to vector<1x16xf32>
    %231 = arith.select %228, %230, %218 : vector<1x16xi1>, vector<1x16xf32>
    %c14 = arith.constant 14 : index
    %232 = memref.load %arg1[%c14] : memref<16xi32, #tpu.memory_space<smem>>
    %233 = arith.index_cast %232 : i32 to index
    %c0_117 = arith.constant 0 : index
    %c0_118 = arith.constant 0 : index
    %234 = vector.load %arg4[%233, %c0_117, %c0_118] : memref<16x1x32xf32, #tpu.memory_space<vmem>>, vector<1x1x32xf32>
    %235 = vector.shape_cast %234 : vector<1x1x32xf32> to vector<1x32xf32>
    %c0_119 = arith.constant 0 : index
    %c0_120 = arith.constant 0 : index
    %236 = vector.load %arg6[%c0_119, %c0_120] : memref<1x32xf32, #tpu.memory_space<vmem>>, vector<1x32xf32>
    %237 = arith.mulf %235, %236 : vector<1x32xf32>
    %cst_121 = arith.constant dense<0.000000e+00> : vector<1xf32>
    %238 = vector.multi_reduction <add>, %237, %cst_121 [1] : vector<1x32xf32> to vector<1xf32>
    %239 = vector.shape_cast %238 : vector<1xf32> to vector<1x1xf32>
    %c14_i32 = arith.constant 14 : i32
    %240 = vector.broadcast %c14_i32 : i32 to vector<1x16xi32>
    %241 = arith.cmpi eq, %48, %240 : vector<1x16xi32>
    %242 = vector.shape_cast %239 : vector<1x1xf32> to vector<1x1xf32>
    %243 = vector.broadcast %242 : vector<1x1xf32> to vector<1x16xf32>
    %244 = arith.select %241, %243, %231 : vector<1x16xi1>, vector<1x16xf32>
    %c15 = arith.constant 15 : index
    %245 = memref.load %arg1[%c15] : memref<16xi32, #tpu.memory_space<smem>>
    %246 = arith.index_cast %245 : i32 to index
    %c0_122 = arith.constant 0 : index
    %c0_123 = arith.constant 0 : index
    %247 = vector.load %arg4[%246, %c0_122, %c0_123] : memref<16x1x32xf32, #tpu.memory_space<vmem>>, vector<1x1x32xf32>
    %248 = vector.shape_cast %247 : vector<1x1x32xf32> to vector<1x32xf32>
    %c0_124 = arith.constant 0 : index
    %c0_125 = arith.constant 0 : index
    %249 = vector.load %arg6[%c0_124, %c0_125] : memref<1x32xf32, #tpu.memory_space<vmem>>, vector<1x32xf32>
    %250 = arith.mulf %248, %249 : vector<1x32xf32>
    %cst_126 = arith.constant dense<0.000000e+00> : vector<1xf32>
    %251 = vector.multi_reduction <add>, %250, %cst_126 [1] : vector<1x32xf32> to vector<1xf32>
    %252 = vector.shape_cast %251 : vector<1xf32> to vector<1x1xf32>
    %c15_i32 = arith.constant 15 : i32
    %253 = vector.broadcast %c15_i32 : i32 to vector<1x16xi32>
    %254 = arith.cmpi eq, %48, %253 : vector<1x16xi32>
    %255 = vector.shape_cast %252 : vector<1x1xf32> to vector<1x1xf32>
    %256 = vector.broadcast %255 : vector<1x1xf32> to vector<1x16xf32>
    %257 = arith.select %254, %256, %244 : vector<1x16xi1>, vector<1x16xf32>
    %258 = vector.broadcast %0 : f32 to vector<1x16xf32>
    %259 = arith.addf %257, %258 : vector<1x16xf32>
    %c0_127 = arith.constant 0 : index
    %c0_128 = arith.constant 0 : index
    %260 = vector.load %arg5[%c0_127, %c0_128] : memref<8x16xf32, #tpu.memory_space<vmem>>, vector<8x16xf32>
    %261 = vector.broadcast %259 : vector<1x16xf32> to vector<8x16xf32>
    %262 = arith.mulf %260, %261 : vector<8x16xf32>
    %cst_129 = arith.constant dense<0.000000e+00> : vector<8xf32>
    %263 = vector.multi_reduction <add>, %262, %cst_129 [1] : vector<8x16xf32> to vector<8xf32>
    %264 = vector.shape_cast %263 : vector<8xf32> to vector<8x1xf32>
    %265 = arith.addf %47, %264 : vector<8x1xf32>
    %266 = vector.broadcast %1 : f32 to vector<8x1xf32>
    %267 = arith.addf %265, %266 : vector<8x1xf32>
    %268 = arith.negf %267 : vector<8x1xf32>
    %269 = math.exp %268 : vector<8x1xf32>
    %cst_130 = arith.constant 1.000000e+00 : f32
    %270 = vector.broadcast %cst_130 : f32 to vector<8x1xf32>
    %271 = arith.addf %270, %269 : vector<8x1xf32>
    %272 = arith.divf %270, %271 : vector<8x1xf32>
    %c0_131 = arith.constant 0 : index
    %c0_132 = arith.constant 0 : index
    %273 = vector.load %arg8[%c0_131, %c0_132] : memref<8x1xf32, #tpu.memory_space<vmem>>, vector<8x1xf32>
    tpu.vector_store %arg8[%c0_131, %c0_132], %272 {strides = array<i32>} : memref<8x1xf32, #tpu.memory_space<vmem>>, vector<8x1xf32>,
    return
  }
}

</mosaic_0001>

<llo_original>
// kernel: mlp_model_forward.1
$region0: #{mlp_model_forward.1}
  #allocation0 [shape = 'u32[]', space=smem, size = 0x4, offset = 0x4, fixed_abs, tag = 'smem constant byte address 0x4 - core index']
  #allocation1 [shape = 'u32[144,128]{1,0:T(1,128)}', space=vmem, size = 0x12000, scoped, tag = 'internal scratch']
  #allocation2 [shape = 'f32[8,16]{1,0:T(8,128)}', space=vmem, size = 0x1000, scoped, tag = 'scratch operand']
  %s0 = inlined_call_operand.vmem [shape: s32[8], index: 0, kind: input, shape index: {}]
  %s1 = inlined_call_operand.vmem [shape: s32[16], index: 1, kind: input, shape index: {}]
  %s2 = inlined_call_operand.vmem [shape: f32[2], index: 2, kind: input, shape index: {}]
  %s3 = inlined_call_operand.vmem [shape: f32[20,1,16], index: 3, kind: input, shape index: {}]
  %s4 = inlined_call_operand.vmem [shape: f32[16,1,32], index: 4, kind: input, shape index: {}]
  %s5 = inlined_call_operand.vmem [shape: f32[8,16], index: 5, kind: input, shape index: {}]
  %s6 = inlined_call_operand.vmem [shape: f32[1,32], index: 6, kind: input, shape index: {}]
  %s7 = inlined_call_operand.vmem [shape: f32[1,16], index: 7, kind: input, shape index: {}]
  %s8 = inlined_call_operand.vmem [shape: f32[8,1], index: 8, kind: output, shape index: {}]
  %s9 = sld [smem:[#allocation0]]
  $region54: #{mlp_model_forward.1} parent=0
    _
  %s11 = ssub.s32 1, %s9
  %s12 = scalar_select 0, %s11, %s9
  $region1: #{mlp_model_forward.1} parent=0
    #allocation3 [shape = 'u8[512]{0}', space=smem, size = 0x200, scoped, tag = 'input window, operand 0, single buffered']
    #allocation4 [shape = 's32[1]{0}', space=sflag, size = 0x4, scoped, tag = 'scoped memory for mlp_model_forward.1']
    #allocation5 [shape = 'u8[512]{0}', space=smem, size = 0x200, scoped, tag = 'input window, operand 1, single buffered']
    #allocation6 [shape = 's32[1]{0}', space=sflag, size = 0x4, scoped, tag = 'scoped memory for mlp_model_forward.1']
    #allocation7 [shape = 'u8[512]{0}', space=smem, size = 0x200, scoped, tag = 'input window, operand 2, single buffered']
    %13 = vsyncpa [#allocation4], 0
    %14 = vsyncpa [#allocation6], 0
    // Predicated region
    $region2: #{mlp_model_forward.1} parent=1 // pred_check
      _
    $region3: #{mlp_model_forward.1} parent=1 // pred_check_branch
      %16 = sbr.rel (0) target = $region5
    $region4: #{mlp_model_forward.1} parent=1 // pred_region
      %s18 = ssub.s32 16, 16
      %19 = vsyncadd [#allocation4], %s18
      %s21 = sshll.u32 %s0, 4
      %s22 = int_to_ptr.vmem [resolvable:$true] %s21
      %24 = dma.vmem_to_smem %s22, 16, [#allocation3], [#allocation4]
    $region5: #{mlp_model_forward.1} parent=1 // pred_fallthru
      _
    // Predicated region
    $region6: #{mlp_model_forward.1} parent=1 // pred_check
      _
    $region7: #{mlp_model_forward.1} parent=1 // pred_check_branch
      %26 = sbr.rel (0) target = $region9
    $region8: #{mlp_model_forward.1} parent=1 // pred_region
      %s28 = ssub.s32 16, 16
      %29 = vsyncadd [#allocation6], %s28
      %s31 = sshll.u32 %s1, 4
      %s32 = int_to_ptr.vmem [resolvable:$true] %s31
      %34 = dma.vmem_to_smem %s32, 16, [#allocation5], [#allocation6]
    $region9: #{mlp_model_forward.1} parent=1 // pred_fallthru
      _
    // Predicated region
    $region10: #{mlp_model_forward.1} parent=1 // pred_check
      _
    $region11: #{mlp_model_forward.1} parent=1 // pred_check_branch
      %36 = sbr.rel (0) target = $region13
    $region12: #{mlp_model_forward.1} parent=1 // pred_region
      %s38 = ssub.s32 16, 16
      %39 = vsyncadd [#allocation6], %s38
      %s41 = sshll.u32 %s2, 4
      %s42 = int_to_ptr.vmem [resolvable:$true] %s41
      %44 = dma.vmem_to_smem %s42, 16, [#allocation7], [#allocation6]
    $region13: #{mlp_model_forward.1} parent=1 // pred_fallthru
      _
    // Predicated region
    $region14: #{mlp_model_forward.1} parent=1 // pred_check
      _
    $region15: #{mlp_model_forward.1} parent=1 // pred_check_branch
      %46 = sbr.rel (0) target = $region17
    $region16: #{mlp_model_forward.1} parent=1 // pred_region
      _
    $region17: #{mlp_model_forward.1} parent=1 // pred_fallthru
      _
    // Predicated region
    $region18: #{mlp_model_forward.1} parent=1 // pred_check
      _
    $region19: #{mlp_model_forward.1} parent=1 // pred_check_branch
      %48 = sbr.rel (0) target = $region21
    $region20: #{mlp_model_forward.1} parent=1 // pred_region
      _
    $region21: #{mlp_model_forward.1} parent=1 // pred_fallthru
      _
    // Predicated region
    $region22: #{mlp_model_forward.1} parent=1 // pred_check
      _
    $region23: #{mlp_model_forward.1} parent=1 // pred_check_branch
      %50 = sbr.rel (0) target = $region25
    $region24: #{mlp_model_forward.1} parent=1 // pred_region
      _
    $region25: #{mlp_model_forward.1} parent=1 // pred_fallthru
      _
    // Predicated region
    $region26: #{mlp_model_forward.1} parent=1 // pred_check
      _
    $region27: #{mlp_model_forward.1} parent=1 // pred_check_branch
      %52 = sbr.rel (0) target = $region29
    $region28: #{mlp_model_forward.1} parent=1 // pred_region
      _
    $region29: #{mlp_model_forward.1} parent=1 // pred_fallthru
      _
    // Predicated region
    $region30: #{mlp_model_forward.1} parent=1 // pred_check
      _
    $region31: #{mlp_model_forward.1} parent=1 // pred_check_branch
      %54 = sbr.rel (0) target = $region33
    $region32: #{mlp_model_forward.1} parent=1 // pred_region
      _
    $region33: #{mlp_model_forward.1} parent=1 // pred_fallthru
      _
    // Predicated region
    $region34: #{mlp_model_forward.1} parent=1 // pred_check
      _
    $region35: #{mlp_model_forward.1} parent=1 // pred_check_branch
      %56 = sbr.rel (0) target = $region37
    $region36: #{mlp_model_forward.1} parent=1 // pred_region
      %57 = dma.done [#allocation4], 16
    $region37: #{mlp_model_forward.1} parent=1 // pred_fallthru
      _
    // Predicated region
    $region38: #{mlp_model_forward.1} parent=1 // pred_check
      _
    $region39: #{mlp_model_forward.1} parent=1 // pred_check_branch
      %59 = sbr.rel (0) target = $region41
    $region40: #{mlp_model_forward.1} parent=1 // pred_region
      %60 = dma.done [#allocation6], 16
    $region41: #{mlp_model_forward.1} parent=1 // pred_fallthru
      _
    // Predicated region
    $region42: #{mlp_model_forward.1} parent=1 // pred_check
      _
    $region43: #{mlp_model_forward.1} parent=1 // pred_check_branch
      %62 = sbr.rel (0) target = $region45
    $region44: #{mlp_model_forward.1} parent=1 // pred_region
      %63 = dma.done [#allocation6], 16
    $region45: #{mlp_model_forward.1} parent=1 // pred_fallthru
      _
    %64 = sfence
    %s65 = sld [smem:[#allocation7]]
    %s66 = sld [smem:[#allocation7 + $0x1]]
    %s67 = sld [smem:[#allocation3]]
    %s68 = scalar_lea.vmem %s3, %s67
    %v69 = vld [vmem:[%s68] sm:$0x1]
    %vm70 = vcmask 122880
    %71 = vst.msk [vmem:[#allocation2] sm:$0x1] %vm70, %v69
    %s72 = sld [smem:[#allocation3 + $0x1]]
    %s73 = scalar_lea.vmem %s3, %s72
    %v74 = vld [vmem:[%s73] sm:$0x1]
    %75 = vst.msk [vmem:[#allocation2 + $0x1] sm:$0x1] %vm70, %v74
    %s76 = sld [smem:[#allocation3 + $0x2]]
    %s77 = scalar_lea.vmem %s3, %s76
    %v78 = vld [vmem:[%s77] sm:$0x1]
    %79 = vst.msk [vmem:[#allocation2 + $0x2] sm:$0x1] %vm70, %v78
    %s80 = sld [smem:[#allocation3 + $0x3]]
    %s81 = scalar_lea.vmem %s3, %s80
    %v82 = vld [vmem:[%s81] sm:$0x1]
    %83 = vst.msk [vmem:[#allocation2 + $0x3] sm:$0x1] %vm70, %v82
    %s84 = sld [smem:[#allocation3 + $0x4]]
    %s85 = scalar_lea.vmem %s3, %s84
    %v86 = vld [vmem:[%s85] sm:$0x1]
    %87 = vst.msk [vmem:[#allocation2 + $0x4] sm:$0x1] %vm70, %v86
    %s88 = sld [smem:[#allocation3 + $0x5]]
    %s89 = scalar_lea.vmem %s3, %s88
    %v90 = vld [vmem:[%s89] sm:$0x1]
    %91 = vst.msk [vmem:[#allocation2 + $0x5] sm:$0x1] %vm70, %v90
    %s92 = sld [smem:[#allocation3 + $0x6]]
    %s93 = scalar_lea.vmem %s3, %s92
    %v94 = vld [vmem:[%s93] sm:$0x1]
    %95 = vst.msk [vmem:[#allocation2 + $0x6] sm:$0x1] %vm70, %v94
    %s96 = sld [smem:[#allocation3 + $0x7]]
    %s97 = scalar_lea.vmem %s3, %s96
    %v98 = vld [vmem:[%s97] sm:$0x1]
    %99 = vst.msk [vmem:[#allocation2 + $0x7] sm:$0x1] %vm70, %v98
    %v100 = vld [vmem:[#allocation2] sm:$0xff]
    %v101 = vld [vmem:[%s7] sm:$0x1]
    %v103 = vlaneseq
    %v104 = vshrl.u32 %v103, 7
    %v105 = vsub.s32 0, %v104
    %v106 = vrot.slane %v101, %v105
    %v108 = vmul.f32 %v100, %v106
    %vm109 = vcmask 130048
    %v110 = vsel %vm109, %v108, 0.0
    %111 = vadd.xlane.f32.xlu0 %v110
    %v112 = vpop.xlane.xlu0 %111
    %v113 = vlaneseq
    %v114 = vand.u32 %v113, 127
    %s115 = sld [smem:[#allocation5]]
    %s116 = scalar_lea.vmem %s4, %s115
    %v117 = vld [vmem:[%s116] sm:$0x1]
    %v118 = vld [vmem:[%s6] sm:$0x1]
    %v119 = vmul.f32 %v117, %v118
    %vm120 = vcmask 253952
    %v121 = vsel %vm120, %v119, 0.0
    %122 = vadd.xlane.f32.xlu0 %v121
    %v123 = vpop.xlane.xlu0 %122
    %vm124 = vcmp.eq.s32.totalorder %v114, 0
    %v125 = vsel %vm124, %v123, 0.0
    %s126 = sld [smem:[#allocation5 + $0x1]]
    %s127 = scalar_lea.vmem %s4, %s126
    %v128 = vld [vmem:[%s127] sm:$0x1]
    %v129 = vmul.f32 %v128, %v118
    %v130 = vsel %vm120, %v129, 0.0
    %131 = vadd.xlane.f32.xlu0 %v130
    %v132 = vpop.xlane.xlu0 %131
    %vm133 = vcmp.eq.s32.totalorder %v114, 1
    %v134 = vsel %vm133, %v132, %v125
    %s135 = sld [smem:[#allocation5 + $0x2]]
    %s136 = scalar_lea.vmem %s4, %s135
    %v137 = vld [vmem:[%s136] sm:$0x1]
    %v138 = vmul.f32 %v137, %v118
    %v139 = vsel %vm120, %v138, 0.0
    %140 = vadd.xlane.f32.xlu0 %v139
    %v141 = vpop.xlane.xlu0 %140
    %vm142 = vcmp.eq.s32.totalorder %v114, 2
    %v143 = vsel %vm142, %v141, %v134
    %s144 = sld [smem:[#allocation5 + $0x3]]
    %s145 = scalar_lea.vmem %s4, %s144
    %v146 = vld [vmem:[%s145] sm:$0x1]
    %v147 = vmul.f32 %v146, %v118
    %v148 = vsel %vm120, %v147, 0.0
    %149 = vadd.xlane.f32.xlu0 %v148
    %v150 = vpop.xlane.xlu0 %149
    %vm151 = vcmp.eq.s32.totalorder %v114, 3
    %v152 = vsel %vm151, %v150, %v143
    %s153 = sld [smem:[#allocation5 + $0x4]]
    %s154 = scalar_lea.vmem %s4, %s153
    %v155 = vld [vmem:[%s154] sm:$0x1]
    %v156 = vmul.f32 %v155, %v118
    %v157 = vsel %vm120, %v156, 0.0
    %158 = vadd.xlane.f32.xlu0 %v157
    %v159 = vpop.xlane.xlu0 %158
    %vm160 = vcmp.eq.s32.totalorder %v114, 4
    %v161 = vsel %vm160, %v159, %v152
    %s162 = sld [smem:[#allocation5 + $0x5]]
    %s163 = scalar_lea.vmem %s4, %s162
    %v164 = vld [vmem:[%s163] sm:$0x1]
    %v165 = vmul.f32 %v164, %v118
    %v166 = vsel %vm120, %v165, 0.0
    %167 = vadd.xlane.f32.xlu0 %v166
    %v168 = vpop.xlane.xlu0 %167
    %vm169 = vcmp.eq.s32.totalorder %v114, 5
    %v170 = vsel %vm169, %v168, %v161
    %s171 = sld [smem:[#allocation5 + $0x6]]
    %s172 = scalar_lea.vmem %s4, %s171
    %v173 = vld [vmem:[%s172] sm:$0x1]
    %v174 = vmul.f32 %v173, %v118
    %v175 = vsel %vm120, %v174, 0.0
    %176 = vadd.xlane.f32.xlu0 %v175
    %v177 = vpop.xlane.xlu0 %176
    %vm178 = vcmp.eq.s32.totalorder %v114, 6
    %v179 = vsel %vm178, %v177, %v170
    %s180 = sld [smem:[#allocation5 + $0x7]]
    %s181 = scalar_lea.vmem %s4, %s180
    %v182 = vld [vmem:[%s181] sm:$0x1]
    %v183 = vmul.f32 %v182, %v118
    %v184 = vsel %vm120, %v183, 0.0
    %185 = vadd.xlane.f32.xlu0 %v184
    %v186 = vpop.xlane.xlu0 %185
    %vm187 = vcmp.eq.s32.totalorder %v114, 7
    %v188 = vsel %vm187, %v186, %v179
    %s189 = sld [smem:[#allocation5 + $0x8]]
    %s190 = scalar_lea.vmem %s4, %s189
    %v191 = vld [vmem:[%s190] sm:$0x1]
    %v192 = vmul.f32 %v191, %v118
    %v193 = vsel %vm120, %v192, 0.0
    %194 = vadd.xlane.f32.xlu0 %v193
    %v195 = vpop.xlane.xlu0 %194
    %vm196 = vcmp.eq.s32.totalorder %v114, 8
    %v197 = vsel %vm196, %v195, %v188
    %s198 = sld [smem:[#allocation5 + $0x9]]
    %s199 = scalar_lea.vmem %s4, %s198
    %v200 = vld [vmem:[%s199] sm:$0x1]
    %v201 = vmul.f32 %v200, %v118
    %v202 = vsel %vm120, %v201, 0.0
    %203 = vadd.xlane.f32.xlu0 %v202
    %v204 = vpop.xlane.xlu0 %203
    %vm205 = vcmp.eq.s32.totalorder %v114, 9
    %v206 = vsel %vm205, %v204, %v197
    %s207 = sld [smem:[#allocation5 + $0xa]]
    %s208 = scalar_lea.vmem %s4, %s207
    %v209 = vld [vmem:[%s208] sm:$0x1]
    %v210 = vmul.f32 %v209, %v118
    %v211 = vsel %vm120, %v210, 0.0
    %212 = vadd.xlane.f32.xlu0 %v211
    %v213 = vpop.xlane.xlu0 %212
    %vm214 = vcmp.eq.s32.totalorder %v114, 10
    %v215 = vsel %vm214, %v213, %v206
    %s216 = sld [smem:[#allocation5 + $0xb]]
    %s217 = scalar_lea.vmem %s4, %s216
    %v218 = vld [vmem:[%s217] sm:$0x1]
    %v219 = vmul.f32 %v218, %v118
    %v220 = vsel %vm120, %v219, 0.0
    %221 = vadd.xlane.f32.xlu0 %v220
    %v222 = vpop.xlane.xlu0 %221
    %vm223 = vcmp.eq.s32.totalorder %v114, 11
    %v224 = vsel %vm223, %v222, %v215
    %s225 = sld [smem:[#allocation5 + $0xc]]
    %s226 = scalar_lea.vmem %s4, %s225
    %v227 = vld [vmem:[%s226] sm:$0x1]
    %v228 = vmul.f32 %v227, %v118
    %v229 = vsel %vm120, %v228, 0.0
    %230 = vadd.xlane.f32.xlu0 %v229
    %v231 = vpop.xlane.xlu0 %230
    %vm232 = vcmp.eq.s32.totalorder %v114, 12
    %v233 = vsel %vm232, %v231, %v224
    %s234 = sld [smem:[#allocation5 + $0xd]]
    %s235 = scalar_lea.vmem %s4, %s234
    %v236 = vld [vmem:[%s235] sm:$0x1]
    %v237 = vmul.f32 %v236, %v118
    %v238 = vsel %vm120, %v237, 0.0
    %239 = vadd.xlane.f32.xlu0 %v238
    %v240 = vpop.xlane.xlu0 %239
    %vm241 = vcmp.eq.s32.totalorder %v114, 13
    %v242 = vsel %vm241, %v240, %v233
    %s243 = sld [smem:[#allocation5 + $0xe]]
    %s244 = scalar_lea.vmem %s4, %s243
    %v245 = vld [vmem:[%s244] sm:$0x1]
    %v246 = vmul.f32 %v245, %v118
    %v247 = vsel %vm120, %v246, 0.0
    %248 = vadd.xlane.f32.xlu0 %v247
    %v249 = vpop.xlane.xlu0 %248
    %vm250 = vcmp.eq.s32.totalorder %v114, 14
    %v251 = vsel %vm250, %v249, %v242
    %s252 = sld [smem:[#allocation5 + $0xf]]
    %s253 = scalar_lea.vmem %s4, %s252
    %v254 = vld [vmem:[%s253] sm:$0x1]
    %v255 = vmul.f32 %v254, %v118
    %v256 = vsel %vm120, %v255, 0.0
    %257 = vadd.xlane.f32.xlu0 %v256
    %v258 = vpop.xlane.xlu0 %257
    %vm259 = vcmp.eq.s32.totalorder %v114, 15
    %v260 = vsel %vm259, %v258, %v251
    %v261 = vstv %s65
    %v262 = vadd.f32 %v260, %v261
    %v263 = vld [vmem:[%s5] sm:$0xff]
    %v264 = vlaneseq
    %v265 = vshrl.u32 %v264, 7
    %v266 = vsub.s32 0, %v265
    %v267 = vrot.slane %v262, %v266
    %v268 = vmul.f32 %v263, %v267
    %v269 = vsel %vm109, %v268, 0.0
    %270 = vadd.xlane.f32.xlu0 %v269
    %v271 = vpop.xlane.xlu0 %270
    %v272 = vadd.f32 %v112, %v271
    %v273 = vstv %s66
    %v274 = vadd.f32 %v272, %v273
    %v275 = vxor.u32 %v274, 2147483648
    %v276 = vmul.f32 %v275, 1.442695
    %v277 = vpow.pop %v276
    %v278 = vadd.f32 %v277, 1.0
    %v279 = vrcp.pop %v278
    %v280 = vmul.f32 1.0, %v279
    %vm281 = vcmask 7168
    %282 = vst.msk [vmem:[%s8] sm:$0xff] %vm281, %v280
    // Predicated region
    $region46: #{mlp_model_forward.1} parent=1 // pred_check
      _
    $region47: #{mlp_model_forward.1} parent=1 // pred_check_branch
      %284 = sbr.rel (0) target = $region49
    $region48: #{mlp_model_forward.1} parent=1 // pred_region
      _
    $region49: #{mlp_model_forward.1} parent=1 // pred_fallthru
      _
    // Predicated region
    $region50: #{mlp_model_forward.1} parent=1 // pred_check
      _
    $region51: #{mlp_model_forward.1} parent=1 // pred_check_branch
      %286 = sbr.rel (0) target = $region53
    $region52: #{mlp_model_forward.1} parent=1 // pred_region
      _
    $region53: #{mlp_model_forward.1} parent=1 // pred_fallthru
      _
    %287 = vsyncpa [#allocation4], 1
    %288 = vsyncpa [#allocation6], 1

</llo_original>
